<compile_context>
chip_gen: v6e
topology: v6e:2x2x1
jax: 0.10.0
libtpu: 0.0.40
codegen_flags: <defaults>
</compile_context>

<pallas_src>
import jax
import jax.numpy as jnp
from jax import lax
from jax.experimental import pallas as pl
from jax.experimental.pallas import tpu as pltpu

_LANES = 128
_MAX_ROW_BLOCK = 2048        # (2048,128) f32 tile = 1 MiB; 3 inputs x 2 bufs ~ 6 MiB
_PALLAS_MIN_ELEMS = 1 << 16  # below this, the fixed per-grid-step cost dominates
_VMEM_LIMIT_BYTES = 32 * 1024 * 1024


def _round_up(x, m):
    return (x + m - 1) // m * m


def _round_down(x, m):
    return x // m * m


def _cdiv(a, b):
    return -(-a // b)


def _tensorcores_per_device():
    """Best-effort TensorCores-per-device (1 on v5e/v6e, 2 on v4/v5p/v7x)."""
    try:
        kind = jax.local_devices()[0].device_kind.lower()
    except Exception:
        return 1
    for tag in ("v5e", "v5 lite", "v5lite", "v6e", "v6 lite", "v6lite", "v2", "v3"):
        if tag in kind:
            return 1
    for tag in ("v4", "v5p", "v7", "7x"):
        if tag in kind:
            return 2
    return 1


def _row_align(*dtypes):
    """Sublane packing granularity: 8 rows (f32), 16 (bf16), 32 (8-bit)."""
    align = 8
    for dt in dtypes:
        align = max(align, 8 * max(1, 4 // jnp.dtype(dt).itemsize))
    return align


def _make_partial_kernel(n_inner, row_block, rows_total, need_mask):
    """Kernel: accumulate per-lane partial sums of squared errors."""

    def kernel(yt_ref, yp_ref, ys_ref, out_ref):
        i = pl.program_id(1)

        # Output block index is constant along the inner axis, so the (1,2,8,128)
        # block stays VMEM-resident: zero it on this core's first visit.
        @pl.when(i == 0)
        def _():
            out_ref[...] = jnp.zeros_like(out_ref)

        yt = yt_ref[...].astype(jnp.float32)
        d_main = yt - yp_ref[...].astype(jnp.float32)
        d_aux = yt - ys_ref[...].astype(jnp.float32)

        if need_mask:
            # Static bound: rows_total is a Python int baked in at trace time.
            blk = pl.program_id(0) * n_inner + i
            row0 = blk * row_block
            rid = lax.broadcasted_iota(jnp.int32, (row_block, _LANES), 0) + row0
            valid = rid < rows_total
            d_main = jnp.where(valid, d_main, 0.0)
            d_aux = jnp.where(valid, d_aux, 0.0)

        # Layout-free reshape (last two dims stay on the native (8,128) tile),
        # then a pure-VPU axis-0 sum into the small resident accumulator.
        sq_main = (d_main * d_main).reshape(row_block // 8, 8, _LANES)
        sq_aux = (d_aux * d_aux).reshape(row_block // 8, 8, _LANES)
        out_ref[0, 0] += jnp.sum(sq_main, axis=0)
        out_ref[0, 1] += jnp.sum(sq_aux, axis=0)

    return kernel


def _pallas_partial_sums(yt2, yp2, ys2, num_cores):
    """Returns (2,) f32: [sum((yt-yp)^2), sum((yt-ys)^2)] over a (rows,128) slab."""
    rows_total = yt2.shape[0]
    align = _row_align(yt2.dtype, yp2.dtype, ys2.dtype)

    # Largest block that (a) fits the VMEM budget, (b) respects sublane packing,
    # (c) never exceeds the array's row extent (last block may still be partial;
    # that is masked in-kernel).
    row_block = min(
        _MAX_ROW_BLOCK,
        _round_up(_cdiv(rows_total, num_cores), align),
        _round_down(rows_total, align),
    )
    n_blocks_total = _cdiv(rows_total, row_block)
    n_inner = _cdiv(n_blocks_total, num_cores)
    need_mask = num_cores * n_inner * row_block > rows_total

    if num_cores * n_inner > n_blocks_total:
        # Trailing grid steps with no real rows re-read the last real block
        # (fully masked in-kernel); clamp keeps the DMA in bounds.
        def in_map(c, i):
            return (jnp.minimum(c * n_inner + i, n_blocks_total - 1), 0)
    else:
        def in_map(c, i):
            return (c * n_inner + i, 0)

    in_spec = pl.BlockSpec((row_block, _LANES), in_map)
    out_spec = pl.BlockSpec((1, 2, 8, _LANES), lambda c, i: (c, 0, 0, 0))

    item_bytes = sum(jnp.dtype(x.dtype).itemsize for x in (yt2, yp2, ys2))
    cost = pl.CostEstimate(
        flops=8 * rows_total * _LANES,
        transcendentals=0,
        bytes_accessed=rows_total * _LANES * item_bytes + num_cores * 2 * 8 * _LANES * 4,
    )

    # TODO(synk): on v7x, if profiling shows both leading-axis iterations on a
    # single TensorCore, switch the leading axis to pltpu.CORE_PARALLEL (or
    # pl.core_map over pltpu.create_tensorcore_mesh) to use both TCs' HBM BW.
    dim_sems = ("parallel", "arbitrary") if num_cores > 1 else ("arbitrary", "arbitrary")

    partials = pl.pallas_call(
        _make_partial_kernel(n_inner, row_block, rows_total, need_mask),
        out_shape=jax.ShapeDtypeStruct((num_cores, 2, 8, _LANES), jnp.float32),
        grid=(num_cores, n_inner),
        in_specs=[in_spec, in_spec, in_spec],
        out_specs=out_spec,
        compiler_params=pltpu.CompilerParams(
            dimension_semantics=dim_sems,
            vmem_limit_bytes=_VMEM_LIMIT_BYTES,
        ),
        cost_estimate=cost,
    )(yt2, yp2, ys2)

    return jnp.sum(partials, axis=(0, 2, 3))


def socnn_loss(y_true, y_pred, y_sub, alpha=0.1, *, force_pallas=False):
    """Pallas implementation of SOCNNLoss.forward. Returns a scalar f32.

    loss = mean((y_true - y_pred)**2) + alpha * mean((y_true - y_sub)**2)
    Mixed input dtypes are accepted; all accumulation is done in float32.
    """
    assert y_true.shape == y_pred.shape == y_sub.shape
    n_valid = y_true.size
    if n_valid == 0:
        raise ValueError("SOCNNLoss on empty tensors")

    rows_total = n_valid // _LANES
    align = _row_align(y_true.dtype, y_pred.dtype, y_sub.dtype)
    use_pallas = rows_total >= align and (force_pallas or n_valid >= _PALLAS_MIN_ELEMS)

    if not use_pallas:
        # Small-input fast path: a fused XLA reduction beats the fixed
        # per-grid-step pipeline overhead for tiny tensors.
        yt = y_true.astype(jnp.float32)
        main_loss = jnp.mean((yt - y_pred.astype(jnp.float32)) ** 2)
        aux_loss = jnp.mean((yt - y_sub.astype(jnp.float32)) ** 2)
        return main_loss + jnp.float32(alpha) * aux_loss

    num_cores = _tensorcores_per_device()

    n_main = rows_total * _LANES
    lane_tail = n_valid - n_main

    ft = y_true.reshape(-1)
    fp = y_pred.reshape(-1)
    fs = y_sub.reshape(-1)

    def to_slab(flat):
        # Zero-copy reshape when n_valid % 128 == 0 (common case); an unaligned
        # element count pays only a prefix-slice copy (never a full pad pass).
        if lane_tail:
            flat = flat[:n_main]
        return flat.reshape(rows_total, _LANES)

    sums = _pallas_partial_sums(to_slab(ft), to_slab(fp), to_slab(fs), num_cores)
    main_sum = sums[0]
    aux_sum = sums[1]

    if lane_tail:
        # Sub-128 tail (< 128 elements per tensor): reduce in plain XLA.
        tt = ft[n_main:].astype(jnp.float32)
        tp = fp[n_main:].astype(jnp.float32)
        ts = fs[n_main:].astype(jnp.float32)
        main_sum = main_sum + jnp.sum((tt - tp) ** 2)
        aux_sum = aux_sum + jnp.sum((tt - ts) ** 2)

    main_loss = main_sum / n_valid
    aux_loss = aux_sum / n_valid
    return main_loss + jnp.float32(alpha) * aux_loss


if __name__ == "__main__":
    key = jax.random.PRNGKey(0)
    k1, k2, k3 = jax.random.split(key, 3)

    # Test 1: 128-aligned shape (zero-copy slab, exact blocks, no masking).
    shape = (2, 4, 16, 16)  # small NCHW-like predictions/targets
    y_true = jax.random.normal(k1, shape, dtype=jnp.float32)
    y_pred = jax.random.normal(k2, shape, dtype=jnp.float32)
    y_sub = jax.random.normal(k3, shape, dtype=jnp.float32)

    loss = socnn_loss(y_true, y_pred, y_sub, alpha=0.1, force_pallas=True)
    jax.block_until_ready(loss)
    ref = jnp.mean((y_true - y_pred) ** 2) + 0.1 * jnp.mean((y_true - y_sub) ** 2)
    assert jnp.allclose(loss, ref, rtol=1e-5, atol=1e-6), (loss, ref)

    # Test 2: ragged shape (partial last block masked in-kernel + XLA lane tail).
    k4, k5, k6 = jax.random.split(jax.random.PRNGKey(1), 3)
    shape2 = (3, 5, 7, 11)  # 1155 elements: 9 full lane-rows + 3-element tail
    y_true2 = jax.random.normal(k4, shape2, dtype=jnp.float32)
    y_pred2 = jax.random.normal(k5, shape2, dtype=jnp.float32)
    y_sub2 = jax.random.normal(k6, shape2, dtype=jnp.float32)

    loss2 = socnn_loss(y_true2, y_pred2, y_sub2, alpha=0.1, force_pallas=True)
    jax.block_until_ready(loss2)
    ref2 = jnp.mean((y_true2 - y_pred2) ** 2) + 0.1 * jnp.mean((y_true2 - y_sub2) ** 2)
    assert jnp.allclose(loss2, ref2, rtol=1e-5, atol=1e-6), (loss2, ref2)

    print("KERNEL_OK")
</pallas_src>

<mosaic_0001>
module attributes {stable_mosaic.version = 11 : i64} {
  func.func @kernel(%arg0: i32, %arg1: i32, %arg2: memref<16x128xf32, #tpu.memory_space<vmem>>, %arg3: memref<16x128xf32, #tpu.memory_space<vmem>>, %arg4: memref<16x128xf32, #tpu.memory_space<vmem>>, %arg5: memref<1x2x8x128xf32, #tpu.memory_space<vmem>>) attributes {dimension_semantics = [#tpu.dimension_semantics<arbitrary>, #tpu.dimension_semantics<arbitrary>], iteration_bounds = array<i64: 1, 1>, scalar_prefetch = 0 : i64, scratch_operands = 0 : i64, tpu.core_type = #tpu.core_type<tc>, window_params = [{transform_indices = @transform_0, window_bounds = array<i64: 16, 128>}, {transform_indices = @transform_1, window_bounds = array<i64: 16, 128>}, {transform_indices = @transform_2, window_bounds = array<i64: 16, 128>}, {transform_indices = @transform_3, window_bounds = array<i64: 1, 2, 8, 128>}]} {
    %c0_i32 = arith.constant 0 : i32
    %0 = arith.cmpi eq, %arg1, %c0_i32 : i32
    %1 = arith.extui %0 : i1 to i32
    %c0_i32_0 = arith.constant 0 : i32
    %2 = arith.cmpi ne, %1, %c0_i32_0 : i32
    scf.if %2 {
      %cst_22 = arith.constant 0.000000e+00 : f32
      %26 = vector.broadcast %cst_22 : f32 to vector<1x2x8x128xf32>
      %c0_23 = arith.constant 0 : index
      %c0_24 = arith.constant 0 : index
      %c0_25 = arith.constant 0 : index
      %c0_26 = arith.constant 0 : index
      %27 = vector.load %arg5[%c0_23, %c0_24, %c0_25, %c0_26] : memref<1x2x8x128xf32, #tpu.memory_space<vmem>>, vector<1x2x8x128xf32>
      tpu.vector_store %arg5[%c0_23, %c0_24, %c0_25, %c0_26], %26 {strides = array<i32>} : memref<1x2x8x128xf32, #tpu.memory_space<vmem>>, vector<1x2x8x128xf32>,
    } else {
    }
    %c0 = arith.constant 0 : index
    %c0_1 = arith.constant 0 : index
    %3 = vector.load %arg2[%c0, %c0_1] : memref<16x128xf32, #tpu.memory_space<vmem>>, vector<16x128xf32>
    %c0_2 = arith.constant 0 : index
    %c0_3 = arith.constant 0 : index
    %4 = vector.load %arg3[%c0_2, %c0_3] : memref<16x128xf32, #tpu.memory_space<vmem>>, vector<16x128xf32>
    %5 = arith.subf %3, %4 : vector<16x128xf32>
    %c0_4 = arith.constant 0 : index
    %c0_5 = arith.constant 0 : index
    %6 = vector.load %arg4[%c0_4, %c0_5] : memref<16x128xf32, #tpu.memory_space<vmem>>, vector<16x128xf32>
    %7 = arith.subf %3, %6 : vector<16x128xf32>
    %8 = arith.mulf %5, %5 : vector<16x128xf32>
    %9 = vector.shape_cast %8 : vector<16x128xf32> to vector<2x8x128xf32>
    %10 = arith.mulf %7, %7 : vector<16x128xf32>
    %11 = vector.shape_cast %10 : vector<16x128xf32> to vector<2x8x128xf32>
    %c0_6 = arith.constant 0 : index
    %c0_7 = arith.constant 0 : index
    %c0_8 = arith.constant 0 : index
    %c0_9 = arith.constant 0 : index
    %12 = vector.load %arg5[%c0_6, %c0_7, %c0_8, %c0_9] : memref<1x2x8x128xf32, #tpu.memory_space<vmem>>, vector<1x1x8x128xf32>
    %13 = vector.shape_cast %12 : vector<1x1x8x128xf32> to vector<8x128xf32>
    %cst = arith.constant dense<0.000000e+00> : vector<8x128xf32>
    %14 = vector.multi_reduction <add>, %9, %cst [0] : vector<2x8x128xf32> to vector<8x128xf32>
    %15 = arith.addf %13, %14 : vector<8x128xf32>
    %c0_10 = arith.constant 0 : index
    %c0_11 = arith.constant 0 : index
    %c0_12 = arith.constant 0 : index
    %c0_13 = arith.constant 0 : index
    %16 = vector.load %arg5[%c0_10, %c0_11, %c0_12, %c0_13] : memref<1x2x8x128xf32, #tpu.memory_space<vmem>>, vector<1x1x8x128xf32>
    %17 = vector.shape_cast %16 : vector<1x1x8x128xf32> to vector<8x128xf32>
    %18 = vector.shape_cast %15 : vector<8x128xf32> to vector<1x1x8x128xf32>
    tpu.vector_store %arg5[%c0_10, %c0_11, %c0_12, %c0_13], %18 {strides = array<i32>} : memref<1x2x8x128xf32, #tpu.memory_space<vmem>>, vector<1x1x8x128xf32>,
    %c0_14 = arith.constant 0 : index
    %c1 = arith.constant 1 : index
    %c0_15 = arith.constant 0 : index
    %c0_16 = arith.constant 0 : index
    %19 = vector.load %arg5[%c0_14, %c1, %c0_15, %c0_16] : memref<1x2x8x128xf32, #tpu.memory_space<vmem>>, vector<1x1x8x128xf32>
    %20 = vector.shape_cast %19 : vector<1x1x8x128xf32> to vector<8x128xf32>
    %cst_17 = arith.constant dense<0.000000e+00> : vector<8x128xf32>
    %21 = vector.multi_reduction <add>, %11, %cst_17 [0] : vector<2x8x128xf32> to vector<8x128xf32>
    %22 = arith.addf %20, %21 : vector<8x128xf32>
    %c0_18 = arith.constant 0 : index
    %c1_19 = arith.constant 1 : index
    %c0_20 = arith.constant 0 : index
    %c0_21 = arith.constant 0 : index
    %23 = vector.load %arg5[%c0_18, %c1_19, %c0_20, %c0_21] : memref<1x2x8x128xf32, #tpu.memory_space<vmem>>, vector<1x1x8x128xf32>
    %24 = vector.shape_cast %23 : vector<1x1x8x128xf32> to vector<8x128xf32>
    %25 = vector.shape_cast %22 : vector<8x128xf32> to vector<1x1x8x128xf32>
    tpu.vector_store %arg5[%c0_18, %c1_19, %c0_20, %c0_21], %25 {strides = array<i32>} : memref<1x2x8x128xf32, #tpu.memory_space<vmem>>, vector<1x1x8x128xf32>,
    return
  }
  func.func @transform_0(%arg0: i32, %arg1: i32) -> (i32, i32) {
    %c1_i32 = arith.constant 1 : i32
    %0 = arith.muli %arg0, %c1_i32 : i32
    %1 = arith.addi %0, %arg1 : i32
    %c0_i32 = arith.constant 0 : i32
    %c0_i32_0 = arith.constant 0 : i32
    return %1, %c0_i32 : i32, i32
  }
  func.func @transform_1(%arg0: i32, %arg1: i32) -> (i32, i32) {
    %c1_i32 = arith.constant 1 : i32
    %0 = arith.muli %arg0, %c1_i32 : i32
    %1 = arith.addi %0, %arg1 : i32
    %c0_i32 = arith.constant 0 : i32
    %c0_i32_0 = arith.constant 0 : i32
    return %1, %c0_i32 : i32, i32
  }
  func.func @transform_2(%arg0: i32, %arg1: i32) -> (i32, i32) {
    %c1_i32 = arith.constant 1 : i32
    %0 = arith.muli %arg0, %c1_i32 : i32
    %1 = arith.addi %0, %arg1 : i32
    %c0_i32 = arith.constant 0 : i32
    %c0_i32_0 = arith.constant 0 : i32
    return %1, %c0_i32 : i32, i32
  }
  func.func @transform_3(%arg0: i32, %arg1: i32) -> (i32, i32, i32, i32) {
    %c0_i32 = arith.constant 0 : i32
    %c0_i32_0 = arith.constant 0 : i32
    %c0_i32_1 = arith.constant 0 : i32
    %c0_i32_2 = arith.constant 0 : i32
    return %arg0, %c0_i32, %c0_i32_0, %c0_i32_1 : i32, i32, i32, i32
  }
}

</mosaic_0001>

<llo_original>
// kernel: tpu_custom_call.1
$region0: #{tpu_custom_call.1}
  #allocation0 [shape = 'u32[]', space=smem, size = 0x4, offset = 0x4, fixed_abs, tag = 'smem constant byte address 0x4 - core index']
  #allocation1 [shape = 'u32[144,128]{1,0:T(1,128)}', space=vmem, size = 0x12000, scoped, tag = 'internal scratch']
  %s0 = inlined_call_operand.hbm [shape: f32[16,128], index: 0, kind: input, shape index: {}]
  %s1 = inlined_call_operand.hbm [shape: f32[16,128], index: 1, kind: input, shape index: {}]
  %s2 = inlined_call_operand.hbm [shape: f32[16,128], index: 2, kind: input, shape index: {}]
  %s3 = inlined_call_operand.hbm [shape: f32[1,2,8,128], index: 3, kind: output, shape index: {}]
  %s4 = sld [smem:[#allocation0]]
  $region38: #{tpu_custom_call.1} parent=0
    _
  %s6 = ssub.s32 1, %s4
  %s7 = scalar_select 0, %s6, %s4
  $region1: #{tpu_custom_call.1} parent=0
    #allocation2 [shape = 'u8[8192]{0}', space=vmem, size = 0x2000, scoped, tag = 'input window, operand 0, single buffered']
    #allocation3 [shape = 's32[1]{0}', space=sflag, size = 0x4, scoped, tag = 'scoped memory for tpu_custom_call.1']
    #allocation4 [shape = 's32[1]{0}', space=sflag, size = 0x4, scoped, tag = 'scoped memory for tpu_custom_call.1']
    #allocation5 [shape = 'u8[8192]{0}', space=vmem, size = 0x2000, scoped, tag = 'input window, operand 1, single buffered']
    #allocation6 [shape = 's32[1]{0}', space=sflag, size = 0x4, scoped, tag = 'scoped memory for tpu_custom_call.1']
    #allocation7 [shape = 'u8[8192]{0}', space=vmem, size = 0x2000, scoped, tag = 'input window, operand 2, single buffered']
    #allocation8 [shape = 'u8[8192]{0}', space=vmem, size = 0x2000, scoped, tag = 'output window, operand 0, single buffered']
    %8 = vsyncpa [#allocation3], 0
    %9 = vsyncpa [#allocation6], 0
    %10 = vsyncpa [#allocation4], 0
    // Predicated region
    $region2: #{tpu_custom_call.1} parent=1 // pred_check
      _
    $region3: #{tpu_custom_call.1} parent=1 // pred_check_branch
      %12 = sbr.rel (0) target = $region5
    $region4: #{tpu_custom_call.1} parent=1 // pred_region
      %s13 = sadd.s32 0, 0
      %s14 = smul.u32 2, %s13
      %s16 = ssub.s32 256, 256
      %17 = vsyncadd [#allocation3], %s16
      %s18 = smul.addr %s14, 128
      %s19 = scalar_lea.hbm %s0, %s18
      %s20 = sshll.u32 [#allocation2], 4
      %s21 = int_to_ptr.vmem [resolvable:$true] %s20
      %26 = dma.hbm_to_vmem [thread:$0]  %s19, 256, %s21, [#allocation3], 128, 128, 8
    $region5: #{tpu_custom_call.1} parent=1 // pred_fallthru
      _
    // Predicated region
    $region6: #{tpu_custom_call.1} parent=1 // pred_check
      _
    $region7: #{tpu_custom_call.1} parent=1 // pred_check_branch
      %28 = sbr.rel (0) target = $region9
    $region8: #{tpu_custom_call.1} parent=1 // pred_region
      %s29 = sadd.s32 0, 0
      %s30 = smul.u32 2, %s29
      %s32 = ssub.s32 256, 256
      %33 = vsyncadd [#allocation6], %s32
      %s34 = smul.addr %s30, 128
      %s35 = scalar_lea.hbm %s1, %s34
      %s36 = sshll.u32 [#allocation5], 4
      %s37 = int_to_ptr.vmem [resolvable:$true] %s36
      %42 = dma.hbm_to_vmem [thread:$0]  %s35, 256, %s37, [#allocation6], 128, 128, 8
    $region9: #{tpu_custom_call.1} parent=1 // pred_fallthru
      _
    // Predicated region
    $region10: #{tpu_custom_call.1} parent=1 // pred_check
      _
    $region11: #{tpu_custom_call.1} parent=1 // pred_check_branch
      %44 = sbr.rel (0) target = $region13
    $region12: #{tpu_custom_call.1} parent=1 // pred_region
      %s45 = sadd.s32 0, 0
      %s46 = smul.u32 2, %s45
      %s48 = ssub.s32 256, 256
      %49 = vsyncadd [#allocation6], %s48
      %s50 = smul.addr %s46, 128
      %s51 = scalar_lea.hbm %s2, %s50
      %s52 = sshll.u32 [#allocation7], 4
      %s53 = int_to_ptr.vmem [resolvable:$true] %s52
      %58 = dma.hbm_to_vmem [thread:$0]  %s51, 256, %s53, [#allocation6], 128, 128, 8
    $region13: #{tpu_custom_call.1} parent=1 // pred_fallthru
      _
    // Predicated region
    $region14: #{tpu_custom_call.1} parent=1 // pred_check
      _
    $region15: #{tpu_custom_call.1} parent=1 // pred_check_branch
      %60 = sbr.rel (0) target = $region17
    $region16: #{tpu_custom_call.1} parent=1 // pred_region
      %61 = dma.done [#allocation3], 256
    $region17: #{tpu_custom_call.1} parent=1 // pred_fallthru
      _
    // Predicated region
    $region18: #{tpu_custom_call.1} parent=1 // pred_check
      _
    $region19: #{tpu_custom_call.1} parent=1 // pred_check_branch
      %63 = sbr.rel (0) target = $region21
    $region20: #{tpu_custom_call.1} parent=1 // pred_region
      %64 = dma.done [#allocation6], 256
    $region21: #{tpu_custom_call.1} parent=1 // pred_fallthru
      _
    // Predicated region
    $region22: #{tpu_custom_call.1} parent=1 // pred_check
      _
    $region23: #{tpu_custom_call.1} parent=1 // pred_check_branch
      %66 = sbr.rel (0) target = $region25
    $region24: #{tpu_custom_call.1} parent=1 // pred_region
      %67 = dma.done [#allocation6], 256
    $region25: #{tpu_custom_call.1} parent=1 // pred_fallthru
      _
    %s68 = sadd.s32 0, 0
    %s69 = smul.u32 2, %s68
    %s70 = sadd.s32 0, 0
    %s71 = smul.u32 2, %s70
    %s72 = sadd.s32 0, 0
    %s73 = smul.u32 2, %s72
    %p74 = scmp.eq.s32.totalorder 0, 0
    // Predicated region
    $region26: #{tpu_custom_call.1} parent=1 // pred_check
      %p75 = pneg %p74
    $region27: #{tpu_custom_call.1} parent=1 // pred_check_branch
      %77 = sbr.rel (%p75) target = $region29
    $region28: #{tpu_custom_call.1} parent=1 // pred_region
      %78 = vst [vmem:[#allocation8] sm:$0xff] 0.0
      %79 = vst [vmem:[#allocation8 + $0x8] sm:$0xff] 0.0
    $region29: #{tpu_custom_call.1} parent=1 // pred_fallthru
      _
    %v80 = vld [vmem:[#allocation2] sm:$0xff]
    %v81 = vld [vmem:[#allocation2 + $0x8] sm:$0xff]
    %v82 = vld [vmem:[#allocation5] sm:$0xff]
    %v83 = vld [vmem:[#allocation5 + $0x8] sm:$0xff]
    %v84 = vsub.f32 %v80, %v82
    %v85 = vsub.f32 %v81, %v83
    %v86 = vld [vmem:[#allocation7] sm:$0xff]
    %v87 = vld [vmem:[#allocation7 + $0x8] sm:$0xff]
    %v88 = vsub.f32 %v80, %v86
    %v89 = vsub.f32 %v81, %v87
    %v90 = vmul.f32 %v84, %v84
    %v91 = vmul.f32 %v85, %v85
    %v92 = vmul.f32 %v88, %v88
    %v93 = vmul.f32 %v89, %v89
    %v94 = vld [vmem:[#allocation8] sm:$0xff]
    %v95 = vadd.f32 %v90, %v91
    %v96 = vadd.f32 %v94, %v95
    %97 = vst [vmem:[#allocation8] sm:$0xff] %v96
    %s98 = scalar_lea.vmem [#allocation8], 8
    %v99 = vld [vmem:[%s98] sm:$0xff]
    %v100 = vadd.f32 %v92, %v93
    %v101 = vadd.f32 %v99, %v100
    %102 = vst [vmem:[%s98] sm:$0xff] %v101
    // Predicated region
    $region30: #{tpu_custom_call.1} parent=1 // pred_check
      _
    $region31: #{tpu_custom_call.1} parent=1 // pred_check_branch
      %104 = sbr.rel (0) target = $region33
    $region32: #{tpu_custom_call.1} parent=1 // pred_region
      %s106 = ssub.s32 256, 256
      %107 = vsyncadd [#allocation4], %s106
      %s108 = sshll.u32 [#allocation8], 4
      %s109 = int_to_ptr.vmem [resolvable:$true] %s108
      %114 = dma.vmem_to_hbm [thread:$0]  %s109, 256, %s3, [#allocation4], 128, 128, 8
    $region33: #{tpu_custom_call.1} parent=1 // pred_fallthru
      _
    // Predicated region
    $region34: #{tpu_custom_call.1} parent=1 // pred_check
      _
    $region35: #{tpu_custom_call.1} parent=1 // pred_check_branch
      %116 = sbr.rel (0) target = $region37
    $region36: #{tpu_custom_call.1} parent=1 // pred_region
      %117 = dma.done [#allocation4], 256
    $region37: #{tpu_custom_call.1} parent=1 // pred_fallthru
      _
    %118 = vsyncpa [#allocation3], 1
    %119 = vsyncpa [#allocation6], 1
    %120 = vsyncpa [#allocation4], 1

</llo_original>
